<compile_context>
chip_gen: v6e
topology: v6e:2x2x1
jax: 0.10.0
libtpu: 0.0.40
codegen_flags: <defaults>
</compile_context>

<pallas_src>
import jax
import jax.numpy as jnp
from jax.experimental import pallas as pl
from jax.experimental.pallas import tpu as pltpu

_MIB = 1024 * 1024


def _square_breg_kernel(x_ref, y_ref, rowsq_ref, grad_ref):
    """One (tb, cols) tile: grad = x - y, rowsq = sum((x-y)^2, axis=-1) in f32."""
    x = x_ref[...]
    # Cast y per-tile on the VPU (free in a mem-bound kernel); avoids a
    # wrapper-side XLA cast pass that would rewrite all of y in HBM first.
    y = y_ref[...].astype(x.dtype)
    diff = x - y
    grad_ref[...] = diff
    d32 = diff.astype(jnp.float32)                 # accumulate in f32
    rowsq_ref[...] = jnp.sum(d32 * d32, axis=-1, keepdims=True)


def _pick_flat_view(n, last_dim):
    """Pick a lane-dense (rows, cols) factorization of the flattened size.

    All candidates are exact divisors of n, so the reshape is a free metadata
    operation (no pad/concat pass over the data). Preference order:
      1. largest multiple of 128 in [128, 2048]  -> unmasked full-lane stores
      2. largest divisor in [128, 4096]          -> near-dense, single lane tile pad
      3. natural channel-last view (rows, last_dim)
    """
    if n >= 128:
        for c in range(2048, 127, -128):
            if n % c == 0:
                return n // c, c
        for c in range(min(n, 4096), 127, -1):
            if n % c == 0:
                return n // c, c
    if last_dim <= 0:
        return 1, max(n, 1)
    return n // last_dim, last_dim


def _vmem_capacity_bytes():
    """Physical VMEM per core; conservative (v7x-sized) fallback."""
    try:
        cap = getattr(pltpu.get_tpu_info(), "vmem_capacity_bytes", None)
        if cap:
            return int(cap)
    except Exception:
        pass
    try:
        kind = jax.devices()[0].device_kind.lower()
        if "v7" in kind:
            return 64 * _MIB
    except Exception:
        pass
    return 64 * _MIB


def _pick_row_block(rows, cols, x_itemsize, y_itemsize, block_rows, vmem_cap):
    """Row block + explicit scoped-VMEM limit sized to the HBM roofline."""
    # Stay well under physical VMEM (the binding constraint on v7x), above the
    # too-small scoped defaults on v5e.
    vmem_limit = int(min(vmem_cap * 3 // 4, 64 * _MIB))
    # Double-buffered per-row bytes: x in + grad out (x.dtype) + y in (native).
    bytes_per_row = 2 * cols * (2 * x_itemsize + y_itemsize)
    # ~60% of the scoped limit for the pipelined operand buffers, the rest as
    # headroom for f32 temporaries / Mosaic internal scratch.
    tb_vmem = max(8, int(0.6 * vmem_limit) // max(bytes_per_row, 1))
    tb = min(block_rows, tb_vmem, rows)
    if tb < rows:
        tb = max(8, (tb // 8) * 8)                 # sublane-legal block
    # Megacore / v7x two-TC: grid axis is "parallel", so make sure medium-sized
    # inputs produce at least 2 grid steps instead of one core-idling block.
    if rows >= 16 and pl.cdiv(rows, tb) < 2:
        tb = max(8, (((rows + 1) // 2) + 7) // 8 * 8)
    return tb, vmem_limit


def square_complex_breg(x, y, *, block_rows=1024):
    """Pallas TPU implementation of SquareComplexBregFunction.forward.

    Returns (loss (), d_loss x.shape, dd_loss x.shape + (1,)), all in x.dtype
    (loss accumulation done in float32 internally).
    """
    # TODO(synk): complex dtypes (|diff|^2 via conj, complex-valued grad) are
    # not supported by the TPU kernel; real floating-point inputs only.
    orig_shape = x.shape
    last_dim = orig_shape[-1] if len(orig_shape) > 0 else 1
    n = x.size

    rows, cols = _pick_flat_view(n, last_dim)
    x2 = jnp.reshape(x, (rows, cols))              # free metadata reshape
    y2 = jnp.reshape(y, (rows, cols))              # y stays in its native dtype

    tb, vmem_limit = _pick_row_block(
        rows, cols, x.dtype.itemsize, y.dtype.itemsize, block_rows,
        _vmem_capacity_bytes())
    grid = (pl.cdiv(rows, tb),)

    cost = pl.CostEstimate(
        flops=3 * n,                               # sub, square, add per element
        transcendentals=0,
        bytes_accessed=n * (2 * x.dtype.itemsize + y.dtype.itemsize) + 4 * rows,
    )

    rowsq, grad = pl.pallas_call(
        _square_breg_kernel,
        out_shape=(
            jax.ShapeDtypeStruct((rows, 1), jnp.float32),
            jax.ShapeDtypeStruct((rows, cols), x.dtype),
        ),
        grid_spec=pltpu.PrefetchScalarGridSpec(
            num_scalar_prefetch=0,
            grid=grid,
            in_specs=[
                pl.BlockSpec((tb, cols), lambda i: (i, 0)),
                pl.BlockSpec((tb, cols), lambda i: (i, 0)),
            ],
            out_specs=[
                pl.BlockSpec((tb, 1), lambda i: (i, 0)),
                pl.BlockSpec((tb, cols), lambda i: (i, 0)),
            ],
        ),
        compiler_params=pltpu.CompilerParams(
            dimension_semantics=("parallel",),
            vmem_limit_bytes=vmem_limit,
        ),
        cost_estimate=cost,
    )(x2, y2)

    # Tiny final reduce + sqrt outside the kernel: keeps the grid axis fully
    # "parallel" (no accumulator serialization across TensorCores).
    loss = jnp.sqrt(jnp.sum(rowsq)).astype(x.dtype)
    d_loss = jnp.reshape(grad, orig_shape)
    # dd_loss is a constant: produced in the wrapper so the kernel has one
    # fewer output DMA stream and XLA can fuse/elide it downstream.
    dd_loss = jnp.ones(orig_shape + (1,), x.dtype)
    return loss, d_loss, dd_loss


def _reference(x, y):
    """Pure-JAX reference mirroring the PyTorch module."""
    y = y.astype(x.dtype)
    diff = x - y
    loss = jnp.sqrt(jnp.sum(jnp.square(diff.astype(jnp.float32)))).astype(x.dtype)
    return loss, diff, jnp.ones(x.shape + (1,), x.dtype)


if __name__ == "__main__":
    key = jax.random.PRNGKey(0)

    cases = [
        # (x_shape, x_dtype, y_dtype)
        ((2, 8, 32), jnp.float32, jnp.float32),     # lane-dense flat view (n=512)
        ((2, 8, 32), jnp.float32, jnp.bfloat16),    # in-kernel y dtype cast
        ((3, 5, 24), jnp.float32, jnp.float32),     # odd size -> divisor fallback
        ((16, 64, 128), jnp.float32, jnp.float32),  # multi-step parallel grid
    ]

    for idx, (shape, xdt, ydt) in enumerate(cases):
        kx, ky = jax.random.split(jax.random.fold_in(key, idx))
        x = jax.random.normal(kx, shape, dtype=jnp.float32).astype(xdt)
        y = jax.random.normal(ky, shape, dtype=jnp.float32).astype(ydt)

        loss, d_loss, dd_loss = square_complex_breg(x, y)
        jax.block_until_ready((loss, d_loss, dd_loss))

        l_r, d_r, dd_r = _reference(x, y)
        assert loss.shape == () and loss.dtype == x.dtype
        assert d_loss.shape == shape and d_loss.dtype == x.dtype
        assert dd_loss.shape == shape + (1,) and dd_loss.dtype == x.dtype
        assert jnp.allclose(loss, l_r, atol=1e-5, rtol=1e-5), f"loss mismatch, case {idx}"
        assert jnp.allclose(d_loss, d_r, atol=1e-6, rtol=1e-6), f"grad mismatch, case {idx}"
        assert jnp.allclose(dd_loss, dd_r), f"hess mismatch, case {idx}"

    print("KERNEL_OK")
</pallas_src>

<mosaic_0001>
module attributes {stable_mosaic.version = 11 : i64} {
  func.func @_square_breg_kernel(%arg0: i32, %arg1: memref<1x512xf32, #tpu.memory_space<vmem>>, %arg2: memref<1x512xf32, #tpu.memory_space<vmem>>, %arg3: memref<1x1xf32, #tpu.memory_space<vmem>>, %arg4: memref<1x512xf32, #tpu.memory_space<vmem>>) attributes {dimension_semantics = [#tpu.dimension_semantics<parallel>], iteration_bounds = array<i64: 1>, scalar_prefetch = 0 : i64, scratch_operands = 0 : i64, tpu.core_type = #tpu.core_type<tc>, window_params = [{transform_indices = @transform_0, window_bounds = array<i64: 1, 512>}, {transform_indices = @transform_1, window_bounds = array<i64: 1, 512>}, {transform_indices = @transform_2, window_bounds = array<i64: 1, 1>}, {transform_indices = @transform_3, window_bounds = array<i64: 1, 512>}]} {
    %c0 = arith.constant 0 : index
    %c0_0 = arith.constant 0 : index
    %0 = vector.load %arg1[%c0, %c0_0] : memref<1x512xf32, #tpu.memory_space<vmem>>, vector<1x512xf32>
    %c0_1 = arith.constant 0 : index
    %c0_2 = arith.constant 0 : index
    %1 = vector.load %arg2[%c0_1, %c0_2] : memref<1x512xf32, #tpu.memory_space<vmem>>, vector<1x512xf32>
    %2 = arith.subf %0, %1 : vector<1x512xf32>
    %c0_3 = arith.constant 0 : index
    %c0_4 = arith.constant 0 : index
    %3 = vector.load %arg4[%c0_3, %c0_4] : memref<1x512xf32, #tpu.memory_space<vmem>>, vector<1x512xf32>
    tpu.vector_store %arg4[%c0_3, %c0_4], %2 {strides = array<i32>} : memref<1x512xf32, #tpu.memory_space<vmem>>, vector<1x512xf32>,
    %4 = arith.mulf %2, %2 : vector<1x512xf32>
    %cst = arith.constant dense<0.000000e+00> : vector<1xf32>
    %5 = vector.multi_reduction <add>, %4, %cst [1] : vector<1x512xf32> to vector<1xf32>
    %6 = vector.shape_cast %5 : vector<1xf32> to vector<1x1xf32>
    %c0_5 = arith.constant 0 : index
    %c0_6 = arith.constant 0 : index
    %7 = vector.load %arg3[%c0_5, %c0_6] : memref<1x1xf32, #tpu.memory_space<vmem>>, vector<1x1xf32>
    tpu.vector_store %arg3[%c0_5, %c0_6], %6 {strides = array<i32>} : memref<1x1xf32, #tpu.memory_space<vmem>>, vector<1x1xf32>,
    return
  }
  func.func @transform_0(%arg0: i32) -> (i32, i32) {
    %c0_i32 = arith.constant 0 : i32
    %c0_i32_0 = arith.constant 0 : i32
    return %arg0, %c0_i32 : i32, i32
  }
  func.func @transform_1(%arg0: i32) -> (i32, i32) {
    %c0_i32 = arith.constant 0 : i32
    %c0_i32_0 = arith.constant 0 : i32
    return %arg0, %c0_i32 : i32, i32
  }
  func.func @transform_2(%arg0: i32) -> (i32, i32) {
    %c0_i32 = arith.constant 0 : i32
    %c0_i32_0 = arith.constant 0 : i32
    return %arg0, %c0_i32 : i32, i32
  }
  func.func @transform_3(%arg0: i32) -> (i32, i32) {
    %c0_i32 = arith.constant 0 : i32
    %c0_i32_0 = arith.constant 0 : i32
    return %arg0, %c0_i32 : i32, i32
  }
}

</mosaic_0001>

<llo_original>
// kernel: tpu_custom_call.1
$region0: #{tpu_custom_call.1}
  #allocation0 [shape = 'u32[]', space=smem, size = 0x4, offset = 0x4, fixed_abs, tag = 'smem constant byte address 0x4 - core index']
  #allocation1 [shape = 'u32[144,128]{1,0:T(1,128)}', space=vmem, size = 0x12000, scoped, tag = 'internal scratch']
  %s0 = inlined_call_operand.hbm [shape: f32[1,512], index: 0, kind: input, shape index: {}]
  %s1 = inlined_call_operand.hbm [shape: f32[1,512], index: 1, kind: input, shape index: {}]
  %s2 = inlined_call_operand.hbm [shape: f32[1,1], index: 2, kind: output, shape index: {0}]
  %s3 = inlined_call_operand.hbm [shape: f32[1,512], index: 3, kind: output, shape index: {1}]
  %4 = xla_tuple %s2, %s3
  %s5 = sld [smem:[#allocation0]]
  $region34: #{tpu_custom_call.1} parent=0
    _
  %s7 = ssub.s32 1, %s5
  %s8 = scalar_select 0, %s7, %s5
  $region1: #{tpu_custom_call.1} parent=0
    #allocation2 [shape = 'u8[2048]{0}', space=vmem, size = 0x800, scoped, tag = 'input window, operand 0, single buffered']
    #allocation3 [shape = 's32[1]{0}', space=sflag, size = 0x4, scoped, tag = 'scoped memory for tpu_custom_call.1']
    #allocation4 [shape = 's32[1]{0}', space=sflag, size = 0x4, scoped, tag = 'scoped memory for tpu_custom_call.1']
    #allocation5 [shape = 'u8[2048]{0}', space=vmem, size = 0x800, scoped, tag = 'input window, operand 1, single buffered']
    #allocation6 [shape = 's32[1]{0}', space=sflag, size = 0x4, scoped, tag = 'scoped memory for tpu_custom_call.1']
    #allocation7 [shape = 'u8[512]{0}', space=vmem, size = 0x400, scoped, tag = 'output window, operand 0, single buffered']
    #allocation8 [shape = 'u8[2048]{0}', space=vmem, size = 0x800, scoped, tag = 'output window, operand 1, single buffered']
    #allocation9 [shape = 's32[1]{0}', space=sflag, size = 0x4, scoped, tag = 'scoped memory for tpu_custom_call.1']
    %9 = vsyncpa [#allocation3], 0
    %10 = vsyncpa [#allocation6], 0
    %11 = vsyncpa [#allocation4], 0
    %12 = vsyncpa [#allocation9], 0
    // Predicated region
    $region2: #{tpu_custom_call.1} parent=1 // pred_check
      _
    $region3: #{tpu_custom_call.1} parent=1 // pred_check_branch
      %14 = sbr.rel (0) target = $region5
    $region4: #{tpu_custom_call.1} parent=1 // pred_region
      %s16 = ssub.s32 64, 64
      %17 = vsyncadd [#allocation3], %s16
      %s19 = sshll.u32 [#allocation2], 4
      %s20 = int_to_ptr.vmem [resolvable:$true] %s19
      %22 = dma.hbm_to_vmem [thread:$0]  %s0, 64, %s20, [#allocation3]
    $region5: #{tpu_custom_call.1} parent=1 // pred_fallthru
      _
    // Predicated region
    $region6: #{tpu_custom_call.1} parent=1 // pred_check
      _
    $region7: #{tpu_custom_call.1} parent=1 // pred_check_branch
      %24 = sbr.rel (0) target = $region9
    $region8: #{tpu_custom_call.1} parent=1 // pred_region
      %s26 = ssub.s32 64, 64
      %27 = vsyncadd [#allocation6], %s26
      %s29 = sshll.u32 [#allocation5], 4
      %s30 = int_to_ptr.vmem [resolvable:$true] %s29
      %32 = dma.hbm_to_vmem [thread:$0]  %s1, 64, %s30, [#allocation6]
    $region9: #{tpu_custom_call.1} parent=1 // pred_fallthru
      _
    // Predicated region
    $region10: #{tpu_custom_call.1} parent=1 // pred_check
      _
    $region11: #{tpu_custom_call.1} parent=1 // pred_check_branch
      %34 = sbr.rel (0) target = $region13
    $region12: #{tpu_custom_call.1} parent=1 // pred_region
      %35 = dma.done [#allocation3], 64
    $region13: #{tpu_custom_call.1} parent=1 // pred_fallthru
      _
    // Predicated region
    $region14: #{tpu_custom_call.1} parent=1 // pred_check
      _
    $region15: #{tpu_custom_call.1} parent=1 // pred_check_branch
      %37 = sbr.rel (0) target = $region17
    $region16: #{tpu_custom_call.1} parent=1 // pred_region
      %38 = dma.done [#allocation6], 64
    $region17: #{tpu_custom_call.1} parent=1 // pred_fallthru
      _
    %v39 = vld [vmem:[#allocation2] sm:$0xf]
    %v40 = vld [vmem:[#allocation5] sm:$0xf]
    %v41 = vsub.f32 %v39, %v40
    %v42 = vlaneseq
    %vm43 = vcmp.ge.s32.totalorder %v42, 0
    %vm44 = vcmp.lt.s32.totalorder %v42, 512
    %vm45 = vmand %vm43, %vm44
    %46 = vst.msk [vmem:[#allocation8] sm:$0xf] %vm45, %v41
    %v47 = vmul.f32 %v41, %v41
    %v49 = vlaneseq
    %v50 = vshrl.u32 %v49, 7
    %v51 = vsub.s32 0, %v50
    %v52 = vrot.slane %v47, %v51
    %v53 = vlaneseq
    %v54 = vshrl.u32 %v53, 7
    %v55 = vsub.s32 1, %v54
    %v56 = vrot.slane %v47, %v55
    %v57 = vlaneseq
    %v58 = vshrl.u32 %v57, 7
    %v59 = vsub.s32 2, %v58
    %v60 = vrot.slane %v47, %v59
    %v61 = vlaneseq
    %v62 = vshrl.u32 %v61, 7
    %v63 = vsub.s32 3, %v62
    %v64 = vrot.slane %v47, %v63
    %vm69 = vcmask 1040384
    %v70 = vsel %vm69, %v52, 0.0
    %v71 = vsel %vm69, %v56, 0.0
    %v72 = vadd.f32 %v70, %v71
    %v73 = vsel %vm69, %v60, 0.0
    %v74 = vadd.f32 %v72, %v73
    %v75 = vsel %vm69, %v64, 0.0
    %v76 = vadd.f32 %v74, %v75
    %77 = vadd.xlane.f32.xlu0 %v76
    %v78 = vpop.xlane.xlu0 %77
    %vm79 = vcmask 0
    %80 = vst.msk [vmem:[#allocation7] sm:$0x1] %vm79, %v78
    // Predicated region
    $region18: #{tpu_custom_call.1} parent=1 // pred_check
      _
    $region19: #{tpu_custom_call.1} parent=1 // pred_check_branch
      %82 = sbr.rel (0) target = $region21
    $region20: #{tpu_custom_call.1} parent=1 // pred_region
      %s84 = ssub.s32 16, 16
      %85 = vsyncadd [#allocation4], %s84
      %s87 = sshll.u32 [#allocation7], 4
      %s88 = int_to_ptr.vmem [resolvable:$true] %s87
      %90 = dma.vmem_to_hbm [thread:$0]  %s88, 16, %s2, [#allocation4]
    $region21: #{tpu_custom_call.1} parent=1 // pred_fallthru
      _
    // Predicated region
    $region22: #{tpu_custom_call.1} parent=1 // pred_check
      _
    $region23: #{tpu_custom_call.1} parent=1 // pred_check_branch
      %92 = sbr.rel (0) target = $region25
    $region24: #{tpu_custom_call.1} parent=1 // pred_region
      %s94 = ssub.s32 64, 64
      %95 = vsyncadd [#allocation9], %s94
      %s97 = sshll.u32 [#allocation8], 4
      %s98 = int_to_ptr.vmem [resolvable:$true] %s97
      %100 = dma.vmem_to_hbm [thread:$0]  %s98, 64, %s3, [#allocation9]
    $region25: #{tpu_custom_call.1} parent=1 // pred_fallthru
      _
    // Predicated region
    $region26: #{tpu_custom_call.1} parent=1 // pred_check
      _
    $region27: #{tpu_custom_call.1} parent=1 // pred_check_branch
      %102 = sbr.rel (0) target = $region29
    $region28: #{tpu_custom_call.1} parent=1 // pred_region
      %103 = dma.done [#allocation4], 16
    $region29: #{tpu_custom_call.1} parent=1 // pred_fallthru
      _
    // Predicated region
    $region30: #{tpu_custom_call.1} parent=1 // pred_check
      _
    $region31: #{tpu_custom_call.1} parent=1 // pred_check_branch
      %105 = sbr.rel (0) target = $region33
    $region32: #{tpu_custom_call.1} parent=1 // pred_region
      %106 = dma.done [#allocation9], 64
    $region33: #{tpu_custom_call.1} parent=1 // pred_fallthru
      _
    %107 = vsyncpa [#allocation3], 1
    %108 = vsyncpa [#allocation6], 1
    %109 = vsyncpa [#allocation4], 1
    %110 = vsyncpa [#allocation9], 1

</llo_original>
